<compile_context>
chip_gen: v7x
topology: tpu7x:2x2x1
jax: 0.10.0
libtpu: 0.0.40
codegen_flags: <defaults>
</compile_context>

<pallas_src>
import functools
import math

import jax
import jax.numpy as jnp
from jax.experimental import pallas as pl
from jax.experimental.pallas import tpu as pltpu


def _sigmoid(v):
    # One EUP transcendental (tanh) instead of exp + reciprocal + selects.
    return 0.5 * jnp.tanh(0.5 * v) + 0.5


def _output_layer_kernel(
    x_ref,      # (C*T, L)    L = block_b*N, lane = node*block_b + sample
    w1_ref,     # (2*Cp, C*T) tconv1 weight (value|gate), GLU residual folded in
    b_ref,      # (3*Cp+1, 1) [b1_value | b1_gate | b2 | b3]   (f32)
    gb_ref,     # (2*Cp, L)   [gamma | beta] expanded per lane (f32)
    w23_ref,    # (Cp+1, Cp)  [(w2 + I) | w3]
    out_ref,    # (1, L)
    *,
    cp: int,
    n: int,
    tb: int,
    inv_cn: float,
    eps: float,
):
    x = x_ref[...]                                   # (C*T, L) mxu dtype
    cdt = x.dtype

    b = b_ref[...]                                   # (3Cp+1, 1) f32
    b1 = b[: 2 * cp]
    b2 = b[2 * cp: 3 * cp]
    b3 = b[3 * cp:]

    # --- tconv1 + GLU: one (2Cp, C*T) x (C*T, L) matmul covers all samples.
    #     Value-path residual x[:, :, T-1, :] is already folded into w1.
    xc = jnp.dot(w1_ref[...], x, preferred_element_type=jnp.float32) + b1
    y = xc[:cp] * _sigmoid(xc[cp:])                  # (Cp, L) f32; padded rows == 0

    # --- per-sample LayerNorm over all (C, N) elements ------------------------
    # Lanes are node-major, so sample s owns lanes {j*tb + s : j < n}: the
    # segmented reduction is n static lane slices of width tb summed on the
    # VPU (no selector matmul, no serialized MXU latency).  One-pass variance.
    s1 = jnp.sum(y, axis=0, keepdims=True)           # (1, L)
    s2 = jnp.sum(y * y, axis=0, keepdims=True)       # (1, L)
    rows = jnp.concatenate([s1, s2], axis=0)         # (2, L) f32
    stats = rows[:, 0:tb]
    for j in range(1, n):
        stats = stats + rows[:, j * tb:(j + 1) * tb]  # (2, tb)
    mean = stats[0:1] * inv_cn                        # (1, tb)
    var = stats[1:2] * inv_cn - mean * mean           # (1, tb)  (kept in f32)
    rstd = jax.lax.rsqrt(var + eps)                   # (1, tb)
    ms = jnp.concatenate([mean, rstd], axis=0)        # (2, tb)
    ms_l = jnp.concatenate([ms] * n, axis=1)          # (2, L): broadcast back to lanes

    gb = gb_ref[...]                                  # (2Cp, L) f32
    y_ln = (y - ms_l[0:1]) * ms_l[1:2] * gb[:cp] + gb[cp:]   # (Cp, L); padded rows == 0

    # --- tconv2 (sigmoid, 1x1) with residual folded into (w2 + I), then fc ----
    w23 = w23_ref[...]                                # (Cp+1, Cp)
    z = _sigmoid(
        jnp.dot(w23[:cp], y_ln.astype(cdt), preferred_element_type=jnp.float32)
        + b2)                                         # (Cp, L)
    out = (jnp.dot(w23[cp:], z.astype(cdt), preferred_element_type=jnp.float32)
           + b3)                                      # (1, L)
    out_ref[...] = out.astype(out_ref.dtype)


def _vmem_limit_bytes():
    phys = 64 * 1024 * 1024          # conservative default = v7x physical VMEM
    try:
        info = pltpu.get_tpu_info()
        cap = int(getattr(info, "vmem_capacity_bytes", 0) or 0)
        if cap > 0:
            phys = cap
    except Exception:
        pass
    return int(min(phys * 3 // 4, 96 * 1024 * 1024))


def output_layer_forward(x, params, *, eps=1e-5, block_b=None,
                         mxu_dtype=jnp.bfloat16):
    """x: (B, C, T, N) float32 (NCHW).  Returns (B, 1, 1, N) float32."""
    B, C, T, N = x.shape
    f32 = jnp.float32
    Cp = -(-C // 8) * 8                   # channel rows padded to a sublane multiple
    itemsize = jnp.dtype(mxu_dtype).itemsize

    # ---- tiling: VMEM-budgeted lane width, lane-dense blocks -----------------
    vmem_limit = _vmem_limit_bytes()
    budget = (vmem_limit * 7) // 10
    per_lane = (2 * C * T * itemsize       # x tile, double-buffered
                + 2 * 4                    # out tile, double-buffered
                + 2 * (2 * Cp) * 4         # resident gamma|beta (+ pipeline buffer)
                + (6 * Cp + 8) * 4)        # f32 kernel temporaries (xc, y, y_ln, z, ...)
    lane_budget = max(128, budget // per_lane)

    u = 128 // math.gcd(N, 128)            # samples per 128-lane multiple
    lane_pad_ok = (-(-B // u) * u) <= max(2 * B, B + 8)
    if not lane_pad_ok:
        # TODO(synk): for N sharing no factor with 128 and tiny batches, pad the
        # node axis (masking padded node lanes in the LN reduction) instead of
        # inflating the batch to `u`; here we fall back to a single ragged block.
        block_b, B_pad, G = B, B, 1
    else:
        if block_b is None:
            block_b = max(u, ((lane_budget // N) // u) * u)
        else:
            block_b = max(u, (-(-block_b // u)) * u)
        block_b = min(block_b, -(-B // u) * u)
        B_pad = -(-B // block_b) * block_b
        G = B_pad // block_b
        # Keep the "parallel" grid axis >= 2 blocks when each half still carries
        # a substantial lane tile, so v7x's two TensorCores both get work.
        if G == 1 and block_b >= 2 * u and (block_b // 2) * N >= 4096:
            block_b = (-(-(block_b // 2) // u)) * u
            B_pad = -(-B // block_b) * block_b
            G = B_pad // block_b
    L = block_b * N

    # ---- fold constants (tiny, plain-JAX glue) --------------------------------
    w1 = params["w1"].reshape(2 * C, C * T).astype(f32)
    # GLU residual: value channel ci gets +1 at flattened input column ci*T+(T-1)
    w1 = w1.at[jnp.arange(C), jnp.arange(C) * T + (T - 1)].add(1.0)
    w1p = jnp.zeros((2 * Cp, C * T), f32)
    w1p = w1p.at[:C].set(w1[:C]).at[Cp:Cp + C].set(w1[C:])      # value | gate halves

    w2 = params["w2"].reshape(C, C).astype(f32)
    w2p = jnp.eye(Cp, dtype=f32).at[:C, :C].add(w2)              # (w2 + I), padded
    w3p = jnp.zeros((1, Cp), f32).at[:, :C].set(
        params["w3"].reshape(1, C).astype(f32))
    w23 = jnp.concatenate([w2p, w3p], axis=0)                    # (Cp+1, Cp)

    bz = jnp.zeros((Cp,), f32)
    b_all = jnp.concatenate([
        bz.at[:C].set(params["b1"][:C].astype(f32)),
        bz.at[:C].set(params["b1"][C:].astype(f32)),
        bz.at[:C].set(params["b2"].astype(f32)),
        params["b3"].astype(f32).reshape(1),
    ]).reshape(3 * Cp + 1, 1)

    # gamma/beta per lane (lane = node*block_b + sample): repeat node columns.
    gamma_p = jnp.zeros((Cp, N), f32).at[:C].set(params["gamma"].astype(f32).T)
    beta_p = jnp.zeros((Cp, N), f32).at[:C].set(params["beta"].astype(f32).T)
    gb = jnp.concatenate([jnp.repeat(gamma_p, block_b, axis=1),
                          jnp.repeat(beta_p, block_b, axis=1)], axis=0)   # (2Cp, L)

    w1p = w1p.astype(mxu_dtype)
    w23 = w23.astype(mxu_dtype)

    # ---- relayout x: cast first (bf16 halves the transpose's HBM writes), pad
    # the batch only if needed, then one transpose to (C*T, G*L) with
    # lane = node*block_b + sample inside each block.
    x_c = x.astype(mxu_dtype)
    if B_pad != B:
        x_c = jnp.pad(x_c, ((0, B_pad - B), (0, 0), (0, 0), (0, 0)))
    x_t = (x_c.reshape(G, block_b, C * T, N)
              .transpose(2, 0, 3, 1)
              .reshape(C * T, G * L))

    kernel = functools.partial(_output_layer_kernel, cp=Cp, n=N, tb=block_b,
                               inv_cn=1.0 / float(C * N), eps=float(eps))
    resident = lambda shape: pl.BlockSpec(shape, lambda g: (0, 0))

    out = pl.pallas_call(
        kernel,
        out_shape=jax.ShapeDtypeStruct((G, L), f32),
        grid_spec=pltpu.PrefetchScalarGridSpec(
            num_scalar_prefetch=0,
            grid=(G,),
            in_specs=[
                pl.BlockSpec((C * T, L), lambda g: (0, g)),   # x, lane-blocked
                resident((2 * Cp, C * T)),                    # w1 (+GLU residual)
                resident((3 * Cp + 1, 1)),                    # b1v|b1g|b2|b3
                resident((2 * Cp, L)),                        # gamma|beta per lane
                resident((Cp + 1, Cp)),                       # (w2+I)|w3
            ],
            out_specs=pl.BlockSpec((1, L), lambda g: (g, 0)),
        ),
        compiler_params=pltpu.CompilerParams(
            dimension_semantics=("parallel",),
            vmem_limit_bytes=vmem_limit,
        ),
    )(x_t, w1p, b_all, gb, w23)

    # (G, L) -> (G, N, block_b) -> (B_pad, N) -> (B, 1, 1, N); padding dropped.
    out = out.reshape(G, N, block_b).transpose(0, 2, 1).reshape(B_pad, N)
    return out[:B].reshape(B, 1, 1, N)


def reference_forward(x, params, *, eps=1e-5):
    """Pure-JAX reference reproducing the PyTorch module semantics."""
    B, C, T, N = x.shape
    w1 = params["w1"].reshape(2 * C, C * T)
    b1 = params["b1"]
    # tconv1 (GLU)
    xc = jnp.einsum("oc,bcn->bon", w1, x.reshape(B, C * T, N)) + b1[None, :, None]
    x_in = x[:, :, T - 1, :]
    y = (xc[:, :C, :] + x_in) * jax.nn.sigmoid(xc[:, C:, :])        # (B, C, N)
    # LayerNorm([n, c]) applied to (B, 1, N, C)
    y_nc = jnp.transpose(y, (0, 2, 1))                              # (B, N, C)
    mean = jnp.mean(y_nc, axis=(1, 2), keepdims=True)
    var = jnp.mean((y_nc - mean) ** 2, axis=(1, 2), keepdims=True)
    y_hat = (y_nc - mean) / jnp.sqrt(var + eps)
    y_ln = y_hat * params["gamma"][None] + params["beta"][None]     # (B, N, C)
    y_ln = jnp.transpose(y_ln, (0, 2, 1))                           # (B, C, N)
    # tconv2 (sigmoid)
    w2 = params["w2"].reshape(C, C)
    z = jax.nn.sigmoid(
        jnp.einsum("oc,bcn->bon", w2, y_ln) + params["b2"][None, :, None] + y_ln)
    # fc
    w3 = params["w3"].reshape(1, C)
    out = jnp.einsum("oc,bcn->bon", w3, z) + params["b3"][None, :, None]
    return out.reshape(B, 1, 1, N)


def init_params(key, C, T, N):
    ks = jax.random.split(key, 8)
    scale = 0.1
    return {
        "w1": scale * jax.random.normal(ks[0], (2 * C, C, T, 1), jnp.float32),
        "b1": scale * jax.random.normal(ks[1], (2 * C,), jnp.float32),
        "gamma": 1.0 + scale * jax.random.normal(ks[2], (N, C), jnp.float32),
        "beta": scale * jax.random.normal(ks[3], (N, C), jnp.float32),
        "w2": scale * jax.random.normal(ks[4], (C, C, 1, 1), jnp.float32),
        "b2": scale * jax.random.normal(ks[5], (C,), jnp.float32),
        "w3": scale * jax.random.normal(ks[6], (1, C, 1, 1), jnp.float32),
        "b3": scale * jax.random.normal(ks[7], (1,), jnp.float32),
    }


if __name__ == "__main__":
    B, C, T, N = 16, 4, 8, 16   # batch, channels, temporal window, nodes
    key = jax.random.PRNGKey(0)
    kx, kp = jax.random.split(key)
    x = jax.random.normal(kx, (B, C, T, N), jnp.float32)
    params = init_params(kp, C, T, N)

    ref = reference_forward(x, params)

    # Default path: bf16 MXU inputs (halves x's HBM traffic); LN math in f32.
    out = jax.block_until_ready(output_layer_forward(x, params))
    assert out.shape == (B, 1, 1, N)
    assert jnp.allclose(out, ref, atol=5e-2, rtol=5e-2), "bf16 mismatch vs reference"

    # f32 MXU path: tight tolerance.
    out_f32 = jax.block_until_ready(
        output_layer_forward(x, params, mxu_dtype=jnp.float32))
    assert jnp.allclose(out_f32, ref, atol=1e-4, rtol=1e-4), "f32 mismatch vs reference"

    # Odd batch exercises the pad-to-lane-dense-block path.
    x_small = jax.random.normal(jax.random.PRNGKey(1), (3, C, T, N), jnp.float32)
    out_small = jax.block_until_ready(
        output_layer_forward(x_small, params, mxu_dtype=jnp.float32))
    assert jnp.allclose(out_small, reference_forward(x_small, params),
                        atol=1e-4, rtol=1e-4), "padded-batch mismatch"

    print("KERNEL_OK")
</pallas_src>

<mosaic_0001>
module attributes {stable_mosaic.version = 11 : i64} {
  func.func @_output_layer_kernel(%arg0: i32, %arg1: memref<32x256xbf16, #tpu.memory_space<vmem>>, %arg2: memref<16x32xbf16, #tpu.memory_space<vmem>>, %arg3: memref<25x1xf32, #tpu.memory_space<vmem>>, %arg4: memref<16x256xf32, #tpu.memory_space<vmem>>, %arg5: memref<9x8xbf16, #tpu.memory_space<vmem>>, %arg6: memref<1x256xf32, #tpu.memory_space<vmem>>) attributes {dimension_semantics = [#tpu.dimension_semantics<parallel>], iteration_bounds = array<i64: 1>, scalar_prefetch = 0 : i64, scratch_operands = 0 : i64, tpu.core_type = #tpu.core_type<tc>, window_params = [{transform_indices = @transform_0, window_bounds = array<i64: 32, 256>}, {pipeline_mode = #tpu.pipeline_mode<synchronous>, transform_indices = @transform_1, window_bounds = array<i64: 16, 32>}, {pipeline_mode = #tpu.pipeline_mode<synchronous>, transform_indices = @transform_2, window_bounds = array<i64: 25, 1>}, {pipeline_mode = #tpu.pipeline_mode<synchronous>, transform_indices = @transform_3, window_bounds = array<i64: 16, 256>}, {pipeline_mode = #tpu.pipeline_mode<synchronous>, transform_indices = @transform_4, window_bounds = array<i64: 9, 8>}, {transform_indices = @transform_5, window_bounds = array<i64: 1, 256>}]} {
    %c0 = arith.constant 0 : index
    %c0_0 = arith.constant 0 : index
    %0 = vector.load %arg1[%c0, %c0_0] : memref<32x256xbf16, #tpu.memory_space<vmem>>, vector<32x256xbf16>
    %c0_1 = arith.constant 0 : index
    %c0_2 = arith.constant 0 : index
    %1 = vector.load %arg3[%c0_1, %c0_2] : memref<25x1xf32, #tpu.memory_space<vmem>>, vector<25x1xf32>
    %2 = vector.extract_strided_slice %1 {offsets = [0, 0], sizes = [16, 1], strides = [1, 1]} : vector<25x1xf32> to vector<16x1xf32>
    %3 = vector.extract_strided_slice %1 {offsets = [16, 0], sizes = [8, 1], strides = [1, 1]} : vector<25x1xf32> to vector<8x1xf32>
    %4 = vector.extract_strided_slice %1 {offsets = [24, 0], sizes = [1, 1], strides = [1, 1]} : vector<25x1xf32> to vector<1x1xf32>
    %c0_3 = arith.constant 0 : index
    %c0_4 = arith.constant 0 : index
    %5 = vector.load %arg2[%c0_3, %c0_4] : memref<16x32xbf16, #tpu.memory_space<vmem>>, vector<16x32xbf16>
    %cst = arith.constant dense<0.000000e+00> : vector<16x256xf32>
    %6 = tpu.matmul %5, %0, %cst {dimension_numbers = #tpu.dot_dimension_numbers<[1], [0], [0], [1], [0, 0, 1, 1], [], []>} : vector<16x32xbf16>, vector<32x256xbf16>, vector<16x256xf32> -> vector<16x256xf32>
    %7 = vector.broadcast %2 : vector<16x1xf32> to vector<16x256xf32>
    %8 = arith.addf %6, %7 : vector<16x256xf32>
    %9 = vector.extract_strided_slice %8 {offsets = [0, 0], sizes = [8, 256], strides = [1, 1]} : vector<16x256xf32> to vector<8x256xf32>
    %10 = vector.extract_strided_slice %8 {offsets = [8, 0], sizes = [8, 256], strides = [1, 1]} : vector<16x256xf32> to vector<8x256xf32>
    %cst_5 = arith.constant 5.000000e-01 : f32
    %11 = vector.broadcast %cst_5 : f32 to vector<8x256xf32>
    %12 = arith.mulf %11, %10 : vector<8x256xf32>
    %13 = math.tanh %12 : vector<8x256xf32>
    %cst_6 = arith.constant 5.000000e-01 : f32
    %14 = vector.broadcast %cst_6 : f32 to vector<8x256xf32>
    %15 = arith.mulf %14, %13 : vector<8x256xf32>
    %cst_7 = arith.constant 5.000000e-01 : f32
    %16 = vector.broadcast %cst_7 : f32 to vector<8x256xf32>
    %17 = arith.addf %15, %16 : vector<8x256xf32>
    %18 = arith.mulf %9, %17 : vector<8x256xf32>
    %cst_8 = arith.constant dense<0.000000e+00> : vector<256xf32>
    %19 = vector.multi_reduction <add>, %18, %cst_8 [0] : vector<8x256xf32> to vector<256xf32>
    %20 = vector.shape_cast %19 : vector<256xf32> to vector<1x256xf32>
    %21 = arith.mulf %18, %18 : vector<8x256xf32>
    %cst_9 = arith.constant dense<0.000000e+00> : vector<256xf32>
    %22 = vector.multi_reduction <add>, %21, %cst_9 [0] : vector<8x256xf32> to vector<256xf32>
    %23 = vector.shape_cast %22 : vector<256xf32> to vector<1x256xf32>
    %24 = tpu.concatenate %20, %23 in 0 : vector<1x256xf32>, vector<1x256xf32> -> vector<2x256xf32>
    %25 = vector.extract_strided_slice %24 {offsets = [0, 0], sizes = [2, 16], strides = [1, 1]} : vector<2x256xf32> to vector<2x16xf32>
    %26 = vector.extract_strided_slice %24 {offsets = [0, 16], sizes = [2, 16], strides = [1, 1]} : vector<2x256xf32> to vector<2x16xf32>
    %27 = arith.addf %25, %26 : vector<2x16xf32>
    %28 = vector.extract_strided_slice %24 {offsets = [0, 32], sizes = [2, 16], strides = [1, 1]} : vector<2x256xf32> to vector<2x16xf32>
    %29 = arith.addf %27, %28 : vector<2x16xf32>
    %30 = vector.extract_strided_slice %24 {offsets = [0, 48], sizes = [2, 16], strides = [1, 1]} : vector<2x256xf32> to vector<2x16xf32>
    %31 = arith.addf %29, %30 : vector<2x16xf32>
    %32 = vector.extract_strided_slice %24 {offsets = [0, 64], sizes = [2, 16], strides = [1, 1]} : vector<2x256xf32> to vector<2x16xf32>
    %33 = arith.addf %31, %32 : vector<2x16xf32>
    %34 = vector.extract_strided_slice %24 {offsets = [0, 80], sizes = [2, 16], strides = [1, 1]} : vector<2x256xf32> to vector<2x16xf32>
    %35 = arith.addf %33, %34 : vector<2x16xf32>
    %36 = vector.extract_strided_slice %24 {offsets = [0, 96], sizes = [2, 16], strides = [1, 1]} : vector<2x256xf32> to vector<2x16xf32>
    %37 = arith.addf %35, %36 : vector<2x16xf32>
    %38 = vector.extract_strided_slice %24 {offsets = [0, 112], sizes = [2, 16], strides = [1, 1]} : vector<2x256xf32> to vector<2x16xf32>
    %39 = arith.addf %37, %38 : vector<2x16xf32>
    %40 = vector.extract_strided_slice %24 {offsets = [0, 128], sizes = [2, 16], strides = [1, 1]} : vector<2x256xf32> to vector<2x16xf32>
    %41 = arith.addf %39, %40 : vector<2x16xf32>
    %42 = vector.extract_strided_slice %24 {offsets = [0, 144], sizes = [2, 16], strides = [1, 1]} : vector<2x256xf32> to vector<2x16xf32>
    %43 = arith.addf %41, %42 : vector<2x16xf32>
    %44 = vector.extract_strided_slice %24 {offsets = [0, 160], sizes = [2, 16], strides = [1, 1]} : vector<2x256xf32> to vector<2x16xf32>
    %45 = arith.addf %43, %44 : vector<2x16xf32>
    %46 = vector.extract_strided_slice %24 {offsets = [0, 176], sizes = [2, 16], strides = [1, 1]} : vector<2x256xf32> to vector<2x16xf32>
    %47 = arith.addf %45, %46 : vector<2x16xf32>
    %48 = vector.extract_strided_slice %24 {offsets = [0, 192], sizes = [2, 16], strides = [1, 1]} : vector<2x256xf32> to vector<2x16xf32>
    %49 = arith.addf %47, %48 : vector<2x16xf32>
    %50 = vector.extract_strided_slice %24 {offsets = [0, 208], sizes = [2, 16], strides = [1, 1]} : vector<2x256xf32> to vector<2x16xf32>
    %51 = arith.addf %49, %50 : vector<2x16xf32>
    %52 = vector.extract_strided_slice %24 {offsets = [0, 224], sizes = [2, 16], strides = [1, 1]} : vector<2x256xf32> to vector<2x16xf32>
    %53 = arith.addf %51, %52 : vector<2x16xf32>
    %54 = vector.extract_strided_slice %24 {offsets = [0, 240], sizes = [2, 16], strides = [1, 1]} : vector<2x256xf32> to vector<2x16xf32>
    %55 = arith.addf %53, %54 : vector<2x16xf32>
    %56 = vector.extract_strided_slice %55 {offsets = [0, 0], sizes = [1, 16], strides = [1, 1]} : vector<2x16xf32> to vector<1x16xf32>
    %cst_10 = arith.constant 1.562500e-02 : f32
    %57 = vector.broadcast %cst_10 : f32 to vector<1x16xf32>
    %58 = arith.mulf %56, %57 : vector<1x16xf32>
    %59 = vector.extract_strided_slice %55 {offsets = [1, 0], sizes = [1, 16], strides = [1, 1]} : vector<2x16xf32> to vector<1x16xf32>
    %cst_11 = arith.constant 1.562500e-02 : f32
    %60 = vector.broadcast %cst_11 : f32 to vector<1x16xf32>
    %61 = arith.mulf %59, %60 : vector<1x16xf32>
    %62 = arith.mulf %58, %58 : vector<1x16xf32>
    %63 = arith.subf %61, %62 : vector<1x16xf32>
    %cst_12 = arith.constant 9.99999974E-6 : f32
    %64 = vector.broadcast %cst_12 : f32 to vector<1x16xf32>
    %65 = arith.addf %63, %64 : vector<1x16xf32>
    %66 = math.rsqrt %65 : vector<1x16xf32>
    %67 = tpu.concatenate %58, %66 in 0 : vector<1x16xf32>, vector<1x16xf32> -> vector<2x16xf32>
    %68 = tpu.concatenate %67, %67, %67, %67, %67, %67, %67, %67, %67, %67, %67, %67, %67, %67, %67, %67 in 1 : vector<2x16xf32>, vector<2x16xf32>, vector<2x16xf32>, vector<2x16xf32>, vector<2x16xf32>, vector<2x16xf32>, vector<2x16xf32>, vector<2x16xf32>, vector<2x16xf32>, vector<2x16xf32>, vector<2x16xf32>, vector<2x16xf32>, vector<2x16xf32>, vector<2x16xf32>, vector<2x16xf32>, vector<2x16xf32> -> vector<2x256xf32>
    %c0_13 = arith.constant 0 : index
    %c0_14 = arith.constant 0 : index
    %69 = vector.load %arg4[%c0_13, %c0_14] : memref<16x256xf32, #tpu.memory_space<vmem>>, vector<16x256xf32>
    %70 = vector.extract_strided_slice %68 {offsets = [0, 0], sizes = [1, 256], strides = [1, 1]} : vector<2x256xf32> to vector<1x256xf32>
    %71 = vector.broadcast %70 : vector<1x256xf32> to vector<8x256xf32>
    %72 = arith.subf %18, %71 : vector<8x256xf32>
    %73 = vector.extract_strided_slice %68 {offsets = [1, 0], sizes = [1, 256], strides = [1, 1]} : vector<2x256xf32> to vector<1x256xf32>
    %74 = vector.broadcast %73 : vector<1x256xf32> to vector<8x256xf32>
    %75 = arith.mulf %72, %74 : vector<8x256xf32>
    %76 = vector.extract_strided_slice %69 {offsets = [0, 0], sizes = [8, 256], strides = [1, 1]} : vector<16x256xf32> to vector<8x256xf32>
    %77 = arith.mulf %75, %76 : vector<8x256xf32>
    %78 = vector.extract_strided_slice %69 {offsets = [8, 0], sizes = [8, 256], strides = [1, 1]} : vector<16x256xf32> to vector<8x256xf32>
    %79 = arith.addf %77, %78 : vector<8x256xf32>
    %c0_15 = arith.constant 0 : index
    %c0_16 = arith.constant 0 : index
    %80 = vector.load %arg5[%c0_15, %c0_16] : memref<9x8xbf16, #tpu.memory_space<vmem>>, vector<9x8xbf16>
    %81 = vector.extract_strided_slice %80 {offsets = [0, 0], sizes = [8, 8], strides = [1, 1]} : vector<9x8xbf16> to vector<8x8xbf16>
    %82 = arith.truncf %79 : vector<8x256xf32> to vector<8x256xbf16>
    %cst_17 = arith.constant dense<0.000000e+00> : vector<8x256xf32>
    %83 = tpu.matmul %81, %82, %cst_17 {dimension_numbers = #tpu.dot_dimension_numbers<[1], [0], [0], [1], [0, 0, 1, 1], [], []>} : vector<8x8xbf16>, vector<8x256xbf16>, vector<8x256xf32> -> vector<8x256xf32>
    %84 = vector.broadcast %3 : vector<8x1xf32> to vector<8x256xf32>
    %85 = arith.addf %83, %84 : vector<8x256xf32>
    %cst_18 = arith.constant 5.000000e-01 : f32
    %86 = vector.broadcast %cst_18 : f32 to vector<8x256xf32>
    %87 = arith.mulf %86, %85 : vector<8x256xf32>
    %88 = math.tanh %87 : vector<8x256xf32>
    %cst_19 = arith.constant 5.000000e-01 : f32
    %89 = vector.broadcast %cst_19 : f32 to vector<8x256xf32>
    %90 = arith.mulf %89, %88 : vector<8x256xf32>
    %cst_20 = arith.constant 5.000000e-01 : f32
    %91 = vector.broadcast %cst_20 : f32 to vector<8x256xf32>
    %92 = arith.addf %90, %91 : vector<8x256xf32>
    %93 = vector.extract_strided_slice %80 {offsets = [8, 0], sizes = [1, 8], strides = [1, 1]} : vector<9x8xbf16> to vector<1x8xbf16>
    %94 = arith.truncf %92 : vector<8x256xf32> to vector<8x256xbf16>
    %cst_21 = arith.constant dense<0.000000e+00> : vector<1x256xf32>
    %95 = tpu.matmul %93, %94, %cst_21 {dimension_numbers = #tpu.dot_dimension_numbers<[1], [0], [0], [1], [0, 0, 1, 1], [], []>} : vector<1x8xbf16>, vector<8x256xbf16>, vector<1x256xf32> -> vector<1x256xf32>
    %96 = vector.broadcast %4 : vector<1x1xf32> to vector<1x256xf32>
    %97 = arith.addf %95, %96 : vector<1x256xf32>
    %c0_22 = arith.constant 0 : index
    %c0_23 = arith.constant 0 : index
    %98 = vector.load %arg6[%c0_22, %c0_23] : memref<1x256xf32, #tpu.memory_space<vmem>>, vector<1x256xf32>
    tpu.vector_store %arg6[%c0_22, %c0_23], %97 {strides = array<i32>} : memref<1x256xf32, #tpu.memory_space<vmem>>, vector<1x256xf32>,
    return
  }
  func.func @transform_0(%arg0: i32) -> (i32, i32) {
    %c0_i32 = arith.constant 0 : i32
    %c0_i32_0 = arith.constant 0 : i32
    return %c0_i32, %arg0 : i32, i32
  }
  func.func @transform_1(%arg0: i32) -> (i32, i32) {
    %c0_i32 = arith.constant 0 : i32
    %c0_i32_0 = arith.constant 0 : i32
    %c0_i32_1 = arith.constant 0 : i32
    return %c0_i32, %c0_i32_0 : i32, i32
  }
  func.func @transform_2(%arg0: i32) -> (i32, i32) {
    %c0_i32 = arith.constant 0 : i32
    %c0_i32_0 = arith.constant 0 : i32
    %c0_i32_1 = arith.constant 0 : i32
    return %c0_i32, %c0_i32_0 : i32, i32
  }
  func.func @transform_3(%arg0: i32) -> (i32, i32) {
    %c0_i32 = arith.constant 0 : i32
    %c0_i32_0 = arith.constant 0 : i32
    %c0_i32_1 = arith.constant 0 : i32
    return %c0_i32, %c0_i32_0 : i32, i32
  }
  func.func @transform_4(%arg0: i32) -> (i32, i32) {
    %c0_i32 = arith.constant 0 : i32
    %c0_i32_0 = arith.constant 0 : i32
    %c0_i32_1 = arith.constant 0 : i32
    return %c0_i32, %c0_i32_0 : i32, i32
  }
  func.func @transform_5(%arg0: i32) -> (i32, i32) {
    %c0_i32 = arith.constant 0 : i32
    %c0_i32_0 = arith.constant 0 : i32
    return %arg0, %c0_i32 : i32, i32
  }
}

</mosaic_0001>

<llo_original>
// kernel: tpu_custom_call.1
$region0: #{tpu_custom_call.1}
  #allocation0 [shape = 'u32[]', space=smem, size = 0x4, offset = 0x4, fixed_abs, tag = 'smem constant byte address 0x4 - core index']
  #allocation1 [shape = 'u32[144,128]{1,0:T(1,128)}', space=vmem, size = 0x12000, scoped, tag = 'internal scratch']
  %s0 = inlined_call_operand.vmem [shape: bf16[32,256], index: 0, kind: input, shape index: {}]
  %s1 = inlined_call_operand.vmem [shape: bf16[16,32], index: 1, kind: input, shape index: {}]
  %s2 = inlined_call_operand.vmem [shape: f32[25,1], index: 2, kind: input, shape index: {}]
  %s3 = inlined_call_operand.hbm [shape: f32[16,256], index: 3, kind: input, shape index: {}]
  %s4 = inlined_call_operand.vmem [shape: bf16[9,8], index: 4, kind: input, shape index: {}]
  %s5 = inlined_call_operand.hbm [shape: f32[1,256], index: 5, kind: output, shape index: {}]
  %s6 = sld [smem:[#allocation0]]
  $region34: #{tpu_custom_call.1} parent=0
    _
  %s8 = ssub.s32 1, %s6
  %s9 = scalar_select 0, %s8, %s6
  $region1: #{tpu_custom_call.1} parent=0
    #allocation2 [shape = 'u8[16384]{0}', space=vmem, size = 0x4000, scoped, tag = 'input window, operand 3, single buffered']
    #allocation3 [shape = 's32[1]{0}', space=sflag, size = 0x4, scoped, tag = 'scoped memory for tpu_custom_call.1']
    #allocation4 [shape = 's32[1]{0}', space=sflag, size = 0x4, scoped, tag = 'scoped memory for tpu_custom_call.1']
    #allocation5 [shape = 'u8[1024]{0}', space=vmem, size = 0x400, scoped, tag = 'output window, operand 0, single buffered']
    %10 = vsyncpa [#allocation3], 0
    %11 = vsyncpa [#allocation4], 0
    // Predicated region
    $region2: #{tpu_custom_call.1} parent=1 // pred_check
      _
    $region3: #{tpu_custom_call.1} parent=1 // pred_check_branch
      %13 = sbr.rel (0) target = $region5
    $region4: #{tpu_custom_call.1} parent=1 // pred_region
      _
    $region5: #{tpu_custom_call.1} parent=1 // pred_fallthru
      _
    // Predicated region
    $region6: #{tpu_custom_call.1} parent=1 // pred_check
      _
    $region7: #{tpu_custom_call.1} parent=1 // pred_check_branch
      %15 = sbr.rel (0) target = $region9
    $region8: #{tpu_custom_call.1} parent=1 // pred_region
      _
    $region9: #{tpu_custom_call.1} parent=1 // pred_fallthru
      _
    // Predicated region
    $region10: #{tpu_custom_call.1} parent=1 // pred_check
      _
    $region11: #{tpu_custom_call.1} parent=1 // pred_check_branch
      %17 = sbr.rel (0) target = $region13
    $region12: #{tpu_custom_call.1} parent=1 // pred_region
      _
    $region13: #{tpu_custom_call.1} parent=1 // pred_fallthru
      _
    // Predicated region
    $region14: #{tpu_custom_call.1} parent=1 // pred_check
      _
    $region15: #{tpu_custom_call.1} parent=1 // pred_check_branch
      %19 = sbr.rel (0) target = $region17
    $region16: #{tpu_custom_call.1} parent=1 // pred_region
      %s21 = ssub.s32 512, 512
      %22 = vsyncadd [#allocation3], %s21
      %s23 = sshll.u32 [#allocation2], 4
      %s24 = int_to_ptr.vmem [resolvable:$true] %s23
      %29 = dma.hbm_to_vmem [thread:$0]  %s3, 512, %s24, [#allocation3], 256, 256, 16
    $region17: #{tpu_custom_call.1} parent=1 // pred_fallthru
      _
    // Predicated region
    $region18: #{tpu_custom_call.1} parent=1 // pred_check
      _
    $region19: #{tpu_custom_call.1} parent=1 // pred_check_branch
      %31 = sbr.rel (0) target = $region21
    $region20: #{tpu_custom_call.1} parent=1 // pred_region
      _
    $region21: #{tpu_custom_call.1} parent=1 // pred_fallthru
      _
    // Predicated region
    $region22: #{tpu_custom_call.1} parent=1 // pred_check
      _
    $region23: #{tpu_custom_call.1} parent=1 // pred_check_branch
      %33 = sbr.rel (0) target = $region25
    $region24: #{tpu_custom_call.1} parent=1 // pred_region
      %34 = dma.done [#allocation3], 512
    $region25: #{tpu_custom_call.1} parent=1 // pred_fallthru
      _
    %v36 = vld [vmem:[%s0] sm:$0xff]
    %v37 = vld [vmem:[%s0 + $0x8] sm:$0xff]
    %v38 = vld [vmem:[%s0 + $0x10] sm:$0xff]
    %v39 = vld [vmem:[%s0 + $0x18] sm:$0xff]
    %v40 = vld [vmem:[%s2] sm:$0xff]
    %v41 = vld [vmem:[%s2 + $0x8] sm:$0xff]
    %v42 = vld [vmem:[%s2 + $0x10] sm:$0xff]
    %v43 = vld [vmem:[%s2 + $0x18] sm:$0x1]
    %v44 = vld [vmem:[%s1] sm:$0xf]
    %v45 = vld [vmem:[%s1 + $0x4] sm:$0xf]
    %47 = vset.pattern.permute.xlu0 0
    %48 = vperm.xlu0 %47, %v40
    %v49 = vpop.permute.xlu0 %48
    %52 = vset.pattern.permute.xlu0 0
    %53 = vperm.xlu0 %52, %v41
    %v54 = vpop.permute.xlu0 %53
    %v58 = vunpack.c.l.b16 %v44
    %v59 = vunpack.c.l.b16 %v45
    %v60 = vpack.c.b16 %v59, %v58
    %v65 = vunpack.c.l.b16 %v36
    %v66 = vunpack.c.h.b16 %v36
    %v67 = vunpack.c.l.b16 %v37
    %v68 = vunpack.c.h.b16 %v37
    %v69 = vunpack.c.l.b16 %v38
    %v70 = vunpack.c.h.b16 %v38
    %v71 = vunpack.c.l.b16 %v39
    %v72 = vunpack.c.h.b16 %v39
    %v73 = vpack.c.b16 %v67, %v65
    %v74 = vpack.c.b16 %v68, %v66
    %v75 = vpack.c.b16 %v71, %v69
    %v76 = vpack.c.b16 %v72, %v70
    %vm81 = vcmask 261120
    %v83 = vsel %vm81, %v60, 0
    %85 = vmatprep.subr.bf16.mxu0 %v74
    %86 = vmatpush1.bf16.msra.mxu0 %v73
    %87 = vmatprep.subr.bf16.mxu0 %v76
    %88 = vmatpush1.bf16.msra.mxu0 %v75
    %89 = vmatprep.subr.bf16.mxu0 0
    %90 = vmatpush1.bf16.msra.mxu0 0
    %91 = vmatprep.subr.bf16.mxu0 0
    %92 = vmatpush1.bf16.msra.mxu0 0
    %93 = vmatprep.subr.bf16.mxu0 0
    %94 = vmatpush1.bf16.msra.mxu0 0
    %95 = vmatprep.subr.bf16.mxu0 0
    %96 = vmatpush1.bf16.msra.mxu0 0
    %97 = vmatprep.subr.bf16.mxu0 0
    %98 = vmatpush1.bf16.msra.mxu0 0
    %99 = vmatprep.subr.bf16.mxu0 0
    %100 = vmatpush1.bf16.msra.mxu0 0
    %101 = vmatprep.subr.bf16.mxu0 0
    %102 = vmatpush1.bf16.msra.mxu0 0
    %103 = vmatprep.subr.bf16.mxu0 0
    %104 = vmatpush1.bf16.msra.mxu0 0
    %105 = vmatprep.subr.bf16.mxu0 0
    %106 = vmatpush1.bf16.msra.mxu0 0
    %107 = vmatprep.subr.bf16.mxu0 0
    %108 = vmatpush1.bf16.msra.mxu0 0
    %109 = vmatprep.subr.bf16.mxu0 0
    %110 = vmatpush1.bf16.msra.mxu0 0
    %111 = vmatprep.subr.bf16.mxu0 0
    %112 = vmatpush1.bf16.msra.mxu0 0
    %113 = vmatprep.subr.bf16.mxu0 0
    %114 = vmatpush1.bf16.msra.mxu0 0
    %115 = vmatprep.subr.bf16.mxu0 0
    %116 = vmatpush1.bf16.msra.mxu0 0
    %117 = vmatprep.mubr.bf16.mxu0 0
    %118 = vmatmul.mubr.bf16.gmra.mrb[0].mxu0 %v83
    %v119 = vpop.f32.mrb[0].mxu0
    %v120 = vadd.f32 %v49, %v119
    %v121 = vpop.f32.mrb[0].mxu0
    %v122 = vadd.f32 %v49, %v121
    %v123 = vpop.f32.mrb[0].mxu0
    %v124 = vadd.f32 %v54, %v123
    %v125 = vpop.f32.mrb[0].mxu0
    %v126 = vadd.f32 %v54, %v125
    %127 = vdwg.mxu0
    %v128 = vmul.f32 %v124, 0.5
    %v129 = vmul.f32 %v126, 0.5
    %v130 = vtanh.pop %v128
    %v131 = vtanh.pop %v129
    %v132 = vmul.f32 %v130, 0.5
    %v133 = vmul.f32 %v131, 0.5
    %v134 = vadd.f32 %v132, 0.5
    %v135 = vadd.f32 %v133, 0.5
    %v136 = vmul.f32 %v120, %v134
    %v137 = vmul.f32 %v122, %v135
    %v138 = vrot.slane %v136, 4
    %v139 = vadd.f32 %v136, %v138
    %v140 = vrot.slane %v139, 2
    %v141 = vadd.f32 %v139, %v140
    %v142 = vrot.slane %v141, 1
    %v143 = vadd.f32 %v141, %v142
    %v144 = vrot.slane %v137, 4
    %v145 = vadd.f32 %v137, %v144
    %v146 = vrot.slane %v145, 2
    %v147 = vadd.f32 %v145, %v146
    %v148 = vrot.slane %v147, 1
    %v149 = vadd.f32 %v147, %v148
    %v150 = vmul.f32 %v136, %v136
    %v151 = vmul.f32 %v137, %v137
    %v152 = vrot.slane %v150, 4
    %v153 = vadd.f32 %v150, %v152
    %v154 = vrot.slane %v153, 2
    %v155 = vadd.f32 %v153, %v154
    %v156 = vrot.slane %v155, 1
    %v157 = vadd.f32 %v155, %v156
    %v158 = vrot.slane %v151, 4
    %v159 = vadd.f32 %v151, %v158
    %v160 = vrot.slane %v159, 2
    %v161 = vadd.f32 %v159, %v160
    %v162 = vrot.slane %v161, 1
    %v163 = vadd.f32 %v161, %v162
    %vm164 = vcmask 1040384
    %v165 = vsel %vm164, %v143, %v157
    %v166 = vsel %vm164, %v149, %v163
    %168 = vrot.lane.b32.xlu0 %v165, 112
    %v169 = vpop.permute.xlu0 %168
    %v171 = vadd.f32 %v165, %v169
    %172 = vrot.lane.b32.xlu0 %v165, 96
    %v173 = vpop.permute.xlu0 %172
    %v175 = vadd.f32 %v171, %v173
    %176 = vrot.lane.b32.xlu0 %v165, 80
    %v177 = vpop.permute.xlu0 %176
    %v179 = vadd.f32 %v175, %v177
    %180 = vrot.lane.b32.xlu0 %v165, 64
    %v181 = vpop.permute.xlu0 %180
    %v183 = vadd.f32 %v179, %v181
    %184 = vrot.lane.b32.xlu0 %v165, 48
    %v185 = vpop.permute.xlu0 %184
    %v187 = vadd.f32 %v183, %v185
    %188 = vrot.lane.b32.xlu0 %v165, 32
    %v189 = vpop.permute.xlu0 %188
    %v191 = vadd.f32 %v187, %v189
    %192 = vrot.lane.b32.xlu0 %v165, 16
    %v193 = vpop.permute.xlu0 %192
    %v195 = vadd.f32 %v191, %v193
    %v196 = vadd.f32 %v195, %v166
    %198 = vrot.lane.b32.xlu0 %v166, 112
    %v199 = vpop.permute.xlu0 %198
    %v201 = vadd.f32 %v196, %v199
    %202 = vrot.lane.b32.xlu0 %v166, 96
    %v203 = vpop.permute.xlu0 %202
    %v205 = vadd.f32 %v201, %v203
    %206 = vrot.lane.b32.xlu0 %v166, 80
    %v207 = vpop.permute.xlu0 %206
    %v209 = vadd.f32 %v205, %v207
    %210 = vrot.lane.b32.xlu0 %v166, 64
    %v211 = vpop.permute.xlu0 %210
    %v213 = vadd.f32 %v209, %v211
    %214 = vrot.lane.b32.xlu0 %v166, 48
    %v215 = vpop.permute.xlu0 %214
    %v217 = vadd.f32 %v213, %v215
    %218 = vrot.lane.b32.xlu0 %v166, 32
    %v219 = vpop.permute.xlu0 %218
    %v221 = vadd.f32 %v217, %v219
    %222 = vrot.lane.b32.xlu0 %v166, 16
    %v223 = vpop.permute.xlu0 %222
    %v225 = vadd.f32 %v221, %v223
    %v226 = vmul.f32 %v225, 0.015625
    %v227 = vmul.f32 %v226, %v226
    %v229 = vrot.slane %v227, 7
    %v231 = vsub.f32 %v226, %v229
    %v232 = vadd.f32 %v231, 1e-05
    %v233 = vrsqrt.pop %v232
    %v234 = vsel %vm164, %v226, %v233
    %236 = vrot.lane.b32.xlu0 %v234, 16
    %v237 = vpop.permute.xlu0 %236
    %239 = vrot.lane.b32.xlu0 %v234, 32
    %v240 = vpop.permute.xlu0 %239
    %242 = vrot.lane.b32.xlu0 %v234, 48
    %v243 = vpop.permute.xlu0 %242
    %245 = vrot.lane.b32.xlu0 %v234, 64
    %v246 = vpop.permute.xlu0 %245
    %248 = vrot.lane.b32.xlu0 %v234, 80
    %v249 = vpop.permute.xlu0 %248
    %251 = vrot.lane.b32.xlu0 %v234, 96
    %v252 = vpop.permute.xlu0 %251
    %254 = vrot.lane.b32.xlu0 %v234, 112
    %v255 = vpop.permute.xlu0 %254
    %vm257 = vcmask 130048
    %v258 = vsel %vm257, %v234, %v237
    %v259 = vsel %vm81, %v258, %v240
    %vm260 = vcmask 392192
    %v261 = vsel %vm260, %v259, %v243
    %vm262 = vcmask 523264
    %v263 = vsel %vm262, %v261, %v246
    %vm264 = vcmask 654336
    %v265 = vsel %vm264, %v263, %v249
    %vm266 = vcmask 785408
    %v267 = vsel %vm266, %v265, %v252
    %vm268 = vcmask 916480
    %v269 = vsel %vm268, %v267, %v255
    %v270 = vld [vmem:[#allocation2] sm:$0xff]
    %v271 = vld [vmem:[#allocation2 + $0x8] sm:$0xff]
    %v272 = vld [vmem:[#allocation2 + $0x10] sm:$0xff]
    %v273 = vld [vmem:[#allocation2 + $0x18] sm:$0xff]
    %v274 = vlaneseq
    %v275 = vshrl.u32 %v274, 7
    %v276 = vsub.s32 0, %v275
    %v277 = vrot.slane %v269, %v276
    %v278 = vsub.f32 %v136, %v277
    %v279 = vsub.f32 %v137, %v277
    %v280 = vlaneseq
    %v281 = vshrl.u32 %v280, 7
    %v282 = vsub.s32 1, %v281
    %v283 = vrot.slane %v269, %v282
    %v284 = vmul.f32 %v278, %v283
    %v285 = vmul.f32 %v279, %v283
    %v286 = vmul.f32 %v284, %v270
    %v287 = vmul.f32 %v285, %v271
    %v288 = vadd.f32 %v286, %v272
    %v289 = vadd.f32 %v287, %v273
    %v290 = vld [vmem:[%s4] sm:$0xf]
    %v291 = vld [vmem:[%s4 + $0x4] sm:$0x1]
    %v292 = vpack.c.bf16 %v288, %v288
    %v293 = vpack.c.bf16 %v289, %v289
    %295 = vset.pattern.permute.xlu0 0
    %296 = vperm.xlu0 %295, %v42
    %v297 = vpop.permute.xlu0 %296
    %vm299 = vcmask 64512
    %v301 = vsel %vm299, %v290, 0
    %vm303 = vcmask 1043456
    %v305 = vsel %vm303, %v292, 0
    %v308 = vsel %vm303, %v293, 0
    %310 = vmatprep.subr.bf16.mxu0 %v308
    %311 = vmatpush1.bf16.msra.mxu0 %v305
    %312 = vmatprep.subr.bf16.mxu0 0
    %313 = vmatpush1.bf16.msra.mxu0 0
    %314 = vmatprep.subr.bf16.mxu0 0
    %315 = vmatpush1.bf16.msra.mxu0 0
    %316 = vmatprep.subr.bf16.mxu0 0
    %317 = vmatpush1.bf16.msra.mxu0 0
    %318 = vmatprep.subr.bf16.mxu0 0
    %319 = vmatpush1.bf16.msra.mxu0 0
    %320 = vmatprep.subr.bf16.mxu0 0
    %321 = vmatpush1.bf16.msra.mxu0 0
    %322 = vmatprep.subr.bf16.mxu0 0
    %323 = vmatpush1.bf16.msra.mxu0 0
    %324 = vmatprep.subr.bf16.mxu0 0
    %325 = vmatpush1.bf16.msra.mxu0 0
    %326 = vmatprep.subr.bf16.mxu0 0
    %327 = vmatpush1.bf16.msra.mxu0 0
    %328 = vmatprep.subr.bf16.mxu0 0
    %329 = vmatpush1.bf16.msra.mxu0 0
    %330 = vmatprep.subr.bf16.mxu0 0
    %331 = vmatpush1.bf16.msra.mxu0 0
    %332 = vmatprep.subr.bf16.mxu0 0
    %333 = vmatpush1.bf16.msra.mxu0 0
    %334 = vmatprep.subr.bf16.mxu0 0
    %335 = vmatpush1.bf16.msra.mxu0 0
    %336 = vmatprep.subr.bf16.mxu0 0
    %337 = vmatpush1.bf16.msra.mxu0 0
    %338 = vmatprep.subr.bf16.mxu0 0
    %339 = vmatpush1.bf16.msra.mxu0 0
    %340 = vmatprep.subr.bf16.mxu0 0
    %341 = vmatpush1.bf16.msra.mxu0 0
    %342 = vmatprep.mubr.bf16.mxu0 0
    %343 = vmatmul.mubr.bf16.gmra.mrb[0].mxu0 %v301
    %v344 = vpop.f32.mrb[0].mxu0
    %v345 = vadd.f32 %v297, %v344
    %v346 = vpop.f32.mrb[0].mxu0
    %v347 = vadd.f32 %v297, %v346
    %v348 = vpop.f32.mrb[0].mxu0
    %v349 = vpop.f32.mrb[0].mxu0
    %350 = vdwg.mxu0
    %v351 = vmul.f32 %v345, 0.5
    %v352 = vmul.f32 %v347, 0.5
    %v353 = vtanh.pop %v351
    %v354 = vtanh.pop %v352
    %v355 = vmul.f32 %v353, 0.5
    %v356 = vmul.f32 %v354, 0.5
    %v357 = vadd.f32 %v355, 0.5
    %v358 = vadd.f32 %v356, 0.5
    %v359 = vpack.c.bf16 %v357, %v357
    %v360 = vpack.c.bf16 %v358, %v358
    %362 = vset.pattern.permute.xlu0 0
    %363 = vperm.xlu0 %362, %v43
    %v364 = vpop.permute.xlu0 %363
    %v367 = vsel %vm299, %v291, 0
    %v370 = vsel %vm303, %v359, 0
    %v373 = vsel %vm303, %v360, 0
    %375 = vmatprep.subr.bf16.mxu0 %v373
    %376 = vmatpush1.bf16.msra.mxu0 %v370
    %377 = vmatprep.subr.bf16.mxu0 0
    %378 = vmatpush1.bf16.msra.mxu0 0
    %379 = vmatprep.subr.bf16.mxu0 0
    %380 = vmatpush1.bf16.msra.mxu0 0
    %381 = vmatprep.subr.bf16.mxu0 0
    %382 = vmatpush1.bf16.msra.mxu0 0
    %383 = vmatprep.subr.bf16.mxu0 0
    %384 = vmatpush1.bf16.msra.mxu0 0
    %385 = vmatprep.subr.bf16.mxu0 0
    %386 = vmatpush1.bf16.msra.mxu0 0
    %387 = vmatprep.subr.bf16.mxu0 0
    %388 = vmatpush1.bf16.msra.mxu0 0
    %389 = vmatprep.subr.bf16.mxu0 0
    %390 = vmatpush1.bf16.msra.mxu0 0
    %391 = vmatprep.subr.bf16.mxu0 0
    %392 = vmatpush1.bf16.msra.mxu0 0
    %393 = vmatprep.subr.bf16.mxu0 0
    %394 = vmatpush1.bf16.msra.mxu0 0
    %395 = vmatprep.subr.bf16.mxu0 0
    %396 = vmatpush1.bf16.msra.mxu0 0
    %397 = vmatprep.subr.bf16.mxu0 0
    %398 = vmatpush1.bf16.msra.mxu0 0
    %399 = vmatprep.subr.bf16.mxu0 0
    %400 = vmatpush1.bf16.msra.mxu0 0
    %401 = vmatprep.subr.bf16.mxu0 0
    %402 = vmatpush1.bf16.msra.mxu0 0
    %403 = vmatprep.subr.bf16.mxu0 0
    %404 = vmatpush1.bf16.msra.mxu0 0
    %405 = vmatprep.subr.bf16.mxu0 0
    %406 = vmatpush1.bf16.msra.mxu0 0
    %407 = vmatprep.mubr.bf16.mxu0 0
    %408 = vmatmul.mubr.bf16.gmra.mrb[0].mxu0 %v367
    %v409 = vpop.f32.mrb[0].mxu0
    %v410 = vadd.f32 %v364, %v409
    %v411 = vpop.f32.mrb[0].mxu0
    %v412 = vadd.f32 %v364, %v411
    %v413 = vpop.f32.mrb[0].mxu0
    %v414 = vpop.f32.mrb[0].mxu0
    %415 = vdwg.mxu0
    %v418 = vcombine.low %v410, %v412
    %v420 = vunpack.c.l.s4 1966171168
    %v421 = vunpack.c.0.s8 %v420
    %v422 = vlaneseq
    %v423 = vshrl.u32 %v422, 7
    %v424 = vsub.s32 %v421, %v423
    %v425 = vrot.slane %v418, %v424
    %v427 = vunpack.c.l.s4 1966171168
    %v428 = vunpack.c.0.s8 %v427
    %v429 = vlaneseq
    %v430 = vshrl.u32 %v429, 7
    %v431 = vsub.s32 %v428, %v430
    %v432 = vrot.slane %v425, %v431
    %v434 = vlaneseq
    %vm435 = vcmp.ge.s32.totalorder %v434, 0
    %vm436 = vcmp.lt.s32.totalorder %v434, 256
    %vm437 = vmand %vm435, %vm436
    %438 = vst.msk [vmem:[#allocation5] sm:$0x3] %vm437, %v432
    // Predicated region
    $region26: #{tpu_custom_call.1} parent=1 // pred_check
      _
    $region27: #{tpu_custom_call.1} parent=1 // pred_check_branch
      %440 = sbr.rel (0) target = $region29
    $region28: #{tpu_custom_call.1} parent=1 // pred_region
      %s442 = ssub.s32 32, 32
      %443 = vsyncadd [#allocation4], %s442
      %s445 = sshll.u32 [#allocation5], 4
      %s446 = int_to_ptr.vmem [resolvable:$true] %s445
      %448 = dma.vmem_to_hbm [thread:$0]  %s446, 32, %s5, [#allocation4]
    $region29: #{tpu_custom_call.1} parent=1 // pred_fallthru
      _
    // Predicated region
    $region30: #{tpu_custom_call.1} parent=1 // pred_check
      _
    $region31: #{tpu_custom_call.1} parent=1 // pred_check_branch
      %450 = sbr.rel (0) target = $region33
    $region32: #{tpu_custom_call.1} parent=1 // pred_region
      %451 = dma.done [#allocation4], 32
    $region33: #{tpu_custom_call.1} parent=1 // pred_fallthru
      _
    %452 = vsyncpa [#allocation3], 1
    %453 = vsyncpa [#allocation4], 1

</llo_original>
